<compile_context>
chip_gen: v7x
topology: tpu7x:2x2x1
jax: 0.10.0
libtpu: 0.0.40
codegen_flags: <defaults>
</compile_context>

<pallas_src>
import functools
import math

import jax
import jax.numpy as jnp
from jax.experimental import pallas as pl
from jax.experimental.pallas import tpu as pltpu

_LANES = 128
_MAX_ROW_TILE = 4096      # 4096 x 128 x 4 B = 2 MiB per f32 block


def _hash32(x):
    """lowbias32 integer hash on uint32 (good avalanche, cheap VPU ops)."""
    x = x ^ (x >> jnp.uint32(16))
    x = x * jnp.uint32(0x7FEB352D)
    x = x ^ (x >> jnp.uint32(15))
    x = x * jnp.uint32(0x846CA68B)
    x = x ^ (x >> jnp.uint32(16))
    return x


def _bits_to_mantissa_float(bits):
    """uint32 random bits -> f32 uniform in [1, 2) via mantissa stuffing."""
    mant = (bits >> jnp.uint32(9)) | jnp.uint32(0x3F800000)
    return jax.lax.bitcast_convert_type(mant, jnp.float32)


def _gaussian_noise_kernel(seed_ref, x_ref, o_ref, *, sigma):
    tr, tl = x_ref.shape
    row0 = pl.program_id(0) * tr

    # Global element index of every entry in this block.
    rows = jax.lax.broadcasted_iota(jnp.int32, (tr, tl), 0) + row0
    lanes = jax.lax.broadcasted_iota(jnp.int32, (tr, tl), 1)
    idx = (rows * tl + lanes).astype(jnp.uint32)

    # Stateless counter-based RNG keyed on (seed, element index); consecutive
    # user seeds give unrelated streams (seed is mixed + hashed, not added).
    seed = seed_ref[0].astype(jnp.uint32) * jnp.uint32(0x9E3779B9)
    b1 = _hash32(idx ^ seed)
    b2 = _hash32(b1 ^ jnp.uint32(0x85EBCA6B))

    u1 = 2.0 - _bits_to_mantissa_float(b1)          # (0, 1]  (safe for log)
    u2 = _bits_to_mantissa_float(b2) - 1.0          # [0, 1)

    # Box-Muller: standard normal samples.
    r = jnp.sqrt(-2.0 * jnp.log(u1))
    noise = r * jnp.cos(jnp.float32(2.0 * math.pi) * u2)

    scaled = jnp.float32(sigma) * noise
    if o_ref.dtype != jnp.float32:
        scaled = scaled.astype(o_ref.dtype)          # stay in bf16 for bf16 inputs
    o_ref[...] = x_ref[...] + scaled


def gaussian_noise(x, *, sigma=0.0, training=True, seed=0):
    """Pallas implementation of GaussianNoise.forward."""
    if not training or sigma == 0:
        # Eval mode (or sigma == 0): identity, no kernel needed.
        return x

    orig_shape = x.shape
    dtype = x.dtype
    n = x.size

    # Lane-dense 2-D view; pad only when numel is not a multiple of 128.
    flat = x.reshape(-1)
    n_pad = ((n + _LANES - 1) // _LANES) * _LANES
    padded = n_pad != n
    if padded:
        flat = jnp.pad(flat, (0, n_pad - n))
    rows = n_pad // _LANES
    x2d = flat.reshape(rows, _LANES)

    # Block: whole array if small, else ~2 MiB tiles (row_tile multiple of 8).
    row_tile = rows if rows <= _MAX_ROW_TILE else _MAX_ROW_TILE
    grid = ((rows + row_tile - 1) // row_tile,)

    seed_arr = jnp.array([seed], dtype=jnp.int32)
    kernel = functools.partial(_gaussian_noise_kernel, sigma=float(sigma))

    out2d = pl.pallas_call(
        kernel,
        out_shape=jax.ShapeDtypeStruct((rows, _LANES), dtype),
        grid_spec=pltpu.PrefetchScalarGridSpec(
            num_scalar_prefetch=1,
            grid=grid,
            in_specs=[pl.BlockSpec((row_tile, _LANES), lambda i, seed: (i, 0))],
            out_specs=pl.BlockSpec((row_tile, _LANES), lambda i, seed: (i, 0)),
        ),
        compiler_params=pltpu.CompilerParams(
            # Blocks are fully independent (stateless per-element RNG), so the
            # grid can be sharded across TensorCores (v7x megacore).
            dimension_semantics=("parallel",),
            vmem_limit_bytes=32 << 20,
        ),
    )(seed_arr, x2d)

    out = out2d.reshape(-1)
    if padded:
        out = out[:n]
    return out.reshape(orig_shape)


if __name__ == "__main__":
    key = jax.random.PRNGKey(0)
    x = jax.random.normal(key, (2, 4, 16, 16), dtype=jnp.float32)  # NCHW

    sigma = 0.1

    # Training-mode forward (adds noise).
    y_train = gaussian_noise(x, sigma=sigma, training=True, seed=1234)
    y_train = jax.block_until_ready(y_train)
    assert y_train.shape == x.shape and y_train.dtype == x.dtype

    diff = y_train - x
    # Noise should look like sigma * N(0, 1): bounded, non-degenerate.
    assert float(jnp.max(jnp.abs(diff))) < 10.0 * sigma
    assert 0.5 * sigma < float(jnp.std(diff)) < 2.0 * sigma
    assert abs(float(jnp.mean(diff))) < 0.5 * sigma

    # Different seeds -> different noise.
    y_train2 = jax.block_until_ready(
        gaussian_noise(x, sigma=sigma, training=True, seed=1235))
    assert not bool(jnp.array_equal(y_train, y_train2))

    # Eval-mode forward (identity).
    y_eval = gaussian_noise(x, sigma=sigma, training=False)
    y_eval = jax.block_until_ready(y_eval)
    assert bool(jnp.array_equal(y_eval, x))

    print("KERNEL_OK")
</pallas_src>

<mosaic_0001>
module attributes {stable_mosaic.version = 11 : i64} {
  func.func @_gaussian_noise_kernel(%arg0: i32, %arg1: memref<1xi32, #tpu.memory_space<smem>>, %arg2: memref<16x128xf32, #tpu.memory_space<vmem>>, %arg3: memref<16x128xf32, #tpu.memory_space<vmem>>) attributes {dimension_semantics = [#tpu.dimension_semantics<parallel>], iteration_bounds = array<i64: 1>, scalar_prefetch = 1 : i64, scratch_operands = 0 : i64, tpu.core_type = #tpu.core_type<tc>, window_params = [{transform_indices = @transform_0, window_bounds = array<i64: 16, 128>}, {transform_indices = @transform_1, window_bounds = array<i64: 16, 128>}]} {
    %c16_i32 = arith.constant 16 : i32
    %0 = arith.muli %arg0, %c16_i32 : i32
    %1 = tpu.iota {dimensions = array<i32: 0>} : vector<16x128xi32>
    %2 = vector.broadcast %0 : i32 to vector<16x128xi32>
    %3 = arith.addi %1, %2 : vector<16x128xi32>
    %4 = tpu.iota {dimensions = array<i32: 1>} : vector<16x128xi32>
    %c128_i32 = arith.constant 128 : i32
    %5 = vector.broadcast %c128_i32 : i32 to vector<16x128xi32>
    %6 = arith.muli %3, %5 : vector<16x128xi32>
    %7 = arith.addi %6, %4 : vector<16x128xi32>
    %c0 = arith.constant 0 : index
    %8 = memref.load %arg1[%c0] : memref<1xi32, #tpu.memory_space<smem>>
    %c-1640531527_i32 = arith.constant -1640531527 : i32
    %9 = arith.muli %8, %c-1640531527_i32 : i32
    %10 = vector.broadcast %9 : i32 to vector<16x128xi32>
    %11 = arith.xori %7, %10 : vector<16x128xi32>
    %c16_i32_0 = arith.constant 16 : i32
    %12 = vector.broadcast %c16_i32_0 : i32 to vector<16x128xi32>
    %13 = arith.shrui %11, %12 : vector<16x128xi32>
    %14 = arith.xori %11, %13 : vector<16x128xi32>
    %c2146121005_i32 = arith.constant 2146121005 : i32
    %15 = vector.broadcast %c2146121005_i32 : i32 to vector<16x128xi32>
    %16 = arith.muli %14, %15 : vector<16x128xi32>
    %c15_i32 = arith.constant 15 : i32
    %17 = vector.broadcast %c15_i32 : i32 to vector<16x128xi32>
    %18 = arith.shrui %16, %17 : vector<16x128xi32>
    %19 = arith.xori %16, %18 : vector<16x128xi32>
    %c-2073254261_i32 = arith.constant -2073254261 : i32
    %20 = vector.broadcast %c-2073254261_i32 : i32 to vector<16x128xi32>
    %21 = arith.muli %19, %20 : vector<16x128xi32>
    %c16_i32_1 = arith.constant 16 : i32
    %22 = vector.broadcast %c16_i32_1 : i32 to vector<16x128xi32>
    %23 = arith.shrui %21, %22 : vector<16x128xi32>
    %24 = arith.xori %21, %23 : vector<16x128xi32>
    %c-2048144789_i32 = arith.constant -2048144789 : i32
    %25 = vector.broadcast %c-2048144789_i32 : i32 to vector<16x128xi32>
    %26 = arith.xori %24, %25 : vector<16x128xi32>
    %c16_i32_2 = arith.constant 16 : i32
    %27 = vector.broadcast %c16_i32_2 : i32 to vector<16x128xi32>
    %28 = arith.shrui %26, %27 : vector<16x128xi32>
    %29 = arith.xori %26, %28 : vector<16x128xi32>
    %c2146121005_i32_3 = arith.constant 2146121005 : i32
    %30 = vector.broadcast %c2146121005_i32_3 : i32 to vector<16x128xi32>
    %31 = arith.muli %29, %30 : vector<16x128xi32>
    %c15_i32_4 = arith.constant 15 : i32
    %32 = vector.broadcast %c15_i32_4 : i32 to vector<16x128xi32>
    %33 = arith.shrui %31, %32 : vector<16x128xi32>
    %34 = arith.xori %31, %33 : vector<16x128xi32>
    %c-2073254261_i32_5 = arith.constant -2073254261 : i32
    %35 = vector.broadcast %c-2073254261_i32_5 : i32 to vector<16x128xi32>
    %36 = arith.muli %34, %35 : vector<16x128xi32>
    %c16_i32_6 = arith.constant 16 : i32
    %37 = vector.broadcast %c16_i32_6 : i32 to vector<16x128xi32>
    %38 = arith.shrui %36, %37 : vector<16x128xi32>
    %39 = arith.xori %36, %38 : vector<16x128xi32>
    %c9_i32 = arith.constant 9 : i32
    %40 = vector.broadcast %c9_i32 : i32 to vector<16x128xi32>
    %41 = arith.shrui %24, %40 : vector<16x128xi32>
    %c1065353216_i32 = arith.constant 1065353216 : i32
    %42 = vector.broadcast %c1065353216_i32 : i32 to vector<16x128xi32>
    %43 = arith.ori %41, %42 : vector<16x128xi32>
    %44 = tpu.bitcast %43 : vector<16x128xi32> -> vector<16x128xf32>
    %cst = arith.constant 2.000000e+00 : f32
    %45 = vector.broadcast %cst : f32 to vector<16x128xf32>
    %46 = arith.subf %45, %44 : vector<16x128xf32>
    %c9_i32_7 = arith.constant 9 : i32
    %47 = vector.broadcast %c9_i32_7 : i32 to vector<16x128xi32>
    %48 = arith.shrui %39, %47 : vector<16x128xi32>
    %c1065353216_i32_8 = arith.constant 1065353216 : i32
    %49 = vector.broadcast %c1065353216_i32_8 : i32 to vector<16x128xi32>
    %50 = arith.ori %48, %49 : vector<16x128xi32>
    %51 = tpu.bitcast %50 : vector<16x128xi32> -> vector<16x128xf32>
    %cst_9 = arith.constant 1.000000e+00 : f32
    %52 = vector.broadcast %cst_9 : f32 to vector<16x128xf32>
    %53 = arith.subf %51, %52 : vector<16x128xf32>
    %54 = math.log %46 : vector<16x128xf32>
    %cst_10 = arith.constant -2.000000e+00 : f32
    %55 = vector.broadcast %cst_10 : f32 to vector<16x128xf32>
    %56 = arith.mulf %55, %54 : vector<16x128xf32>
    %57 = math.sqrt %56 : vector<16x128xf32>
    %cst_11 = arith.constant 6.28318548 : f32
    %58 = vector.broadcast %cst_11 : f32 to vector<16x128xf32>
    %59 = arith.mulf %58, %53 : vector<16x128xf32>
    %60 = math.cos %59 : vector<16x128xf32>
    %61 = arith.mulf %57, %60 : vector<16x128xf32>
    %cst_12 = arith.constant 1.000000e-01 : f32
    %62 = vector.broadcast %cst_12 : f32 to vector<16x128xf32>
    %63 = arith.mulf %62, %61 : vector<16x128xf32>
    %c0_13 = arith.constant 0 : index
    %c0_14 = arith.constant 0 : index
    %64 = vector.load %arg2[%c0_13, %c0_14] : memref<16x128xf32, #tpu.memory_space<vmem>>, vector<16x128xf32>
    %65 = arith.addf %64, %63 : vector<16x128xf32>
    %c0_15 = arith.constant 0 : index
    %c0_16 = arith.constant 0 : index
    %66 = vector.load %arg3[%c0_15, %c0_16] : memref<16x128xf32, #tpu.memory_space<vmem>>, vector<16x128xf32>
    tpu.vector_store %arg3[%c0_15, %c0_16], %65 {strides = array<i32>} : memref<16x128xf32, #tpu.memory_space<vmem>>, vector<16x128xf32>,
    return
  }
  func.func @transform_0(%arg0: i32, %arg1: memref<1xi32, #tpu.memory_space<smem>>) -> (i32, i32) {
    %c0_i32 = arith.constant 0 : i32
    %c0_i32_0 = arith.constant 0 : i32
    return %arg0, %c0_i32 : i32, i32
  }
  func.func @transform_1(%arg0: i32, %arg1: memref<1xi32, #tpu.memory_space<smem>>) -> (i32, i32) {
    %c0_i32 = arith.constant 0 : i32
    %c0_i32_0 = arith.constant 0 : i32
    return %arg0, %c0_i32 : i32, i32
  }
}

</mosaic_0001>

<llo_original>
// kernel: tpu_custom_call.1
$region0: #{tpu_custom_call.1}
  #allocation0 [shape = 'u32[]', space=smem, size = 0x4, offset = 0x4, fixed_abs, tag = 'smem constant byte address 0x4 - core index']
  #allocation1 [shape = 'u32[144,128]{1,0:T(1,128)}', space=vmem, size = 0x12000, scoped, tag = 'internal scratch']
  #allocation2 [shape = 's32[1]{0}', space=sflag, size = 0x4, scoped, tag = 'scoped memory for tpu_custom_call.1']
  #allocation3 [shape = 's32[1]{0:T(128)S(6)}', space=smem, size = 0x200, scoped, tag = 'prefetched SMEM operand 0']
  %s0 = inlined_call_operand.<no memory space> [shape: s32[1], index: 0, kind: input, shape index: {}]
  %s1 = inlined_call_operand.hbm [shape: f32[16,128], index: 1, kind: input, shape index: {}]
  %s2 = inlined_call_operand.hbm [shape: f32[16,128], index: 2, kind: output, shape index: {}]
  %s3 = sld [smem:[#allocation0]]
  $region18: #{tpu_custom_call.1} parent=0
    _
  %s5 = ssub.s32 1, %s3
  %s6 = scalar_select 0, %s5, %s3
  %7 = sst [smem:[#allocation3]] %s0
  $region1: #{tpu_custom_call.1} parent=0
    #allocation4 [shape = 'u8[8192]{0}', space=vmem, size = 0x2000, scoped, tag = 'input window, operand 1, single buffered']
    #allocation5 [shape = 's32[1]{0}', space=sflag, size = 0x4, scoped, tag = 'scoped memory for tpu_custom_call.1']
    #allocation6 [shape = 's32[1]{0}', space=sflag, size = 0x4, scoped, tag = 'scoped memory for tpu_custom_call.1']
    #allocation7 [shape = 'u8[8192]{0}', space=vmem, size = 0x2000, scoped, tag = 'output window, operand 0, single buffered']
    %8 = vsyncpa [#allocation5], 0
    %9 = vsyncpa [#allocation6], 0
    // Predicated region
    $region2: #{tpu_custom_call.1} parent=1 // pred_check
      _
    $region3: #{tpu_custom_call.1} parent=1 // pred_check_branch
      %11 = sbr.rel (0) target = $region5
    $region4: #{tpu_custom_call.1} parent=1 // pred_region
      %s13 = ssub.s32 256, 256
      %14 = vsyncadd [#allocation5], %s13
      %s15 = sshll.u32 [#allocation4], 4
      %s16 = int_to_ptr.vmem [resolvable:$true] %s15
      %21 = dma.hbm_to_vmem [thread:$0]  %s1, 256, %s16, [#allocation5], 128, 128, 8
    $region5: #{tpu_custom_call.1} parent=1 // pred_fallthru
      _
    // Predicated region
    $region6: #{tpu_custom_call.1} parent=1 // pred_check
      _
    $region7: #{tpu_custom_call.1} parent=1 // pred_check_branch
      %23 = sbr.rel (0) target = $region9
    $region8: #{tpu_custom_call.1} parent=1 // pred_region
      %24 = dma.done [#allocation5], 256
    $region9: #{tpu_custom_call.1} parent=1 // pred_fallthru
      _
    %s25 = smul.u32 0, 16
    %v26 = vlaneseq
    %v27 = vshrl.u32 %v26, 7
    %v28 = vadd.s32 %v27, 8
    %v29 = vstv %s25
    %v30 = vadd.s32 %v27, %v29
    %v31 = vadd.s32 %v28, %v29
    %v32 = vlaneseq
    %v33 = vand.u32 %v32, 127
    %v34 = vmul.u32 %v30, 128
    %v35 = vmul.u32 %v31, 128
    %v36 = vadd.s32 %v34, %v33
    %v37 = vadd.s32 %v35, %v33
    %s38 = sld [smem:[#allocation3]]
    %s39 = smul.u32 %s38, 2654435769
    %v40 = vstv %s39
    %v41 = vxor.u32 %v36, %v40
    %v42 = vxor.u32 %v37, %v40
    %v43 = vshrl.u32 %v41, 16
    %v44 = vshrl.u32 %v42, 16
    %v45 = vxor.u32 %v41, %v43
    %v46 = vxor.u32 %v42, %v44
    %v47 = vmul.u32 %v45, 2146121005
    %v48 = vmul.u32 %v46, 2146121005
    %v49 = vshrl.u32 %v47, 15
    %v50 = vshrl.u32 %v48, 15
    %v51 = vxor.u32 %v47, %v49
    %v52 = vxor.u32 %v48, %v50
    %v53 = vmul.u32 %v51, 2221713035
    %v54 = vmul.u32 %v52, 2221713035
    %v55 = vshrl.u32 %v53, 16
    %v56 = vshrl.u32 %v54, 16
    %v57 = vxor.u32 %v53, %v55
    %v58 = vxor.u32 %v54, %v56
    %v59 = vxor.u32 %v57, 2246822507
    %v60 = vxor.u32 %v58, 2246822507
    %v61 = vshrl.u32 %v59, 16
    %v62 = vshrl.u32 %v60, 16
    %v63 = vxor.u32 %v59, %v61
    %v64 = vxor.u32 %v60, %v62
    %v65 = vmul.u32 %v63, 2146121005
    %v66 = vmul.u32 %v64, 2146121005
    %v67 = vshrl.u32 %v65, 15
    %v68 = vshrl.u32 %v66, 15
    %v69 = vxor.u32 %v65, %v67
    %v70 = vxor.u32 %v66, %v68
    %v71 = vmul.u32 %v69, 2221713035
    %v72 = vmul.u32 %v70, 2221713035
    %v73 = vshrl.u32 %v71, 16
    %v74 = vshrl.u32 %v72, 16
    %v75 = vxor.u32 %v71, %v73
    %v76 = vxor.u32 %v72, %v74
    %v77 = vshrl.u32 %v57, 9
    %v78 = vshrl.u32 %v58, 9
    %v79 = vor.u32 %v77, 1065353216
    %v80 = vor.u32 %v78, 1065353216
    %v83 = vsub.f32 2.0, %v79
    %v84 = vsub.f32 2.0, %v80
    %v85 = vshrl.u32 %v75, 9
    %v86 = vshrl.u32 %v76, 9
    %v87 = vor.u32 %v85, 1065353216
    %v88 = vor.u32 %v86, 1065353216
    %v91 = vsub.f32 %v87, 1.0
    %v92 = vsub.f32 %v88, 1.0
    %v93 = vlog2.pop %v83
    %v94 = vmul.f32 %v93, 0.6931472
    %v95 = vlog2.pop %v84
    %v96 = vmul.f32 %v95, 0.6931472
    %v97 = vmul.f32 %v94, -2.0
    %v98 = vmul.f32 %v96, -2.0
    %v99 = vrsqrt.pop %v97
    %v100 = vmul.f32 %v97, %v99
    %vm101 = vcmp.eq.f32.partialorder %v97, inf
    %v102 = vsel %vm101, %v97, %v100
    %vm103 = vcmp.eq.f32.partialorder %v97, 0.0
    %v104 = vand.u32 %v97, 2147483648
    %v105 = vsel %vm103, %v104, %v102
    %v106 = vrsqrt.pop %v98
    %v107 = vmul.f32 %v98, %v106
    %vm108 = vcmp.eq.f32.partialorder %v98, inf
    %v109 = vsel %vm108, %v98, %v107
    %vm110 = vcmp.eq.f32.partialorder %v98, 0.0
    %v111 = vand.u32 %v98, 2147483648
    %v112 = vsel %vm110, %v111, %v109
    %v113 = vmul.f32 %v91, 6.2831855
    %v114 = vmul.f32 %v92, 6.2831855
    %v115 = vand.u32 2147483647, %v113
    %vm116 = vcmp.le.f32.partialorder %v115, 0.7853982
    %vm117 = vcmp.lt.s32.totalorder %v113, 0
    %v118 = vand.u32 %v113, 2139095040
    %v119 = vshrl.u32 %v118, 23
    %v120 = vsub.s32 %v119, 127
    %v121 = vand.u32 2147483647, %v113
    %v122 = vand.u32 %v121, 8388607
    %v123 = vor.u32 %v122, 8388608
    %v124 = vsub.s32 0, %v123
    %v125 = vadd.s32 %v120, 1
    %vm126 = vcmp.gt.s32.totalorder %v125, 0
    %v127 = vsel %vm126, %v125, 0
    %v128 = vshrl.u32 %v127, 5
    %v129 = vand.u32 %v127, 31
    %v130 = vsub.s32 32, %v129
    %v131 = vshrl.u32 683565275, %v130
    %v132 = vshll.u32 683565275, %v129
    %v133 = vshrl.u32 2475754826, %v130
    %v134 = vor.u32 %v132, %v133
    %v135 = vshll.u32 2475754826, %v129
    %v136 = vshrl.u32 2131351028, %v130
    %v137 = vor.u32 %v135, %v136
    %v138 = vshll.u32 2131351028, %v129
    %v139 = vshrl.u32 2102212464, %v130
    %v140 = vor.u32 %v138, %v139
    %v141 = vshll.u32 2102212464, %v129
    %v142 = vshrl.u32 920167782, %v130
    %v143 = vor.u32 %v141, %v142
    %v144 = vshll.u32 920167782, %v129
    %v145 = vshrl.u32 1326507024, %v130
    %v146 = vor.u32 %v144, %v145
    %vm147 = vcmp.lt.s32.totalorder %v128, 1
    %vm148 = vcmp.lt.s32.totalorder %v128, 2
    %vm149 = vcmp.lt.s32.totalorder %v128, 3
    %vm150 = vcmp.lt.s32.totalorder %v128, 4
    %v151 = vsel %vm147, %v131, %v134
    %v152 = vsel %vm150, %v140, 2102212464
    %v153 = vsel %vm149, %v137, %v152
    %v154 = vsel %vm148, %v151, %v153
    %v155 = vsel %vm147, %v134, %v137
    %v156 = vsel %vm150, %v143, 920167782
    %v157 = vsel %vm149, %v140, %v156
    %v158 = vsel %vm148, %v155, %v157
    %v159 = vsel %vm147, %v137, %v140
    %v160 = vsel %vm150, %v146, 1326507024
    %v161 = vsel %vm149, %v143, %v160
    %v162 = vsel %vm148, %v159, %v161
    %v163 = vshll.u32 %v123, 8
    %v164 = vmul.u32.u64.compose %v163, %v162
    %v165 = vextract.low.u32 %v164
    %v166 = vextract.high.u32 %v164
    %v167 = vmul.u32.u64.compose %v163, %v158
    %v168 = vextract.low.u32 %v167
    %v169 = vextract.high.u32 %v167
    %v170 = vmul.u32 %v163, %v154
    %v171 = vadd.s32 %v166, %v168
    %vm172 = vc.u32 %v166, %v168
    %v173 = vadd.s32 %v169, 1
    %v174 = vsel %vm172, %v173, %v169
    %v175 = vadd.s32 %v170, %v174
    %v176 = vadd.s32 %v175, 536870912
    %v177 = vshrl.u32 %v176, 30
    %v178 = vshll.u32 %v177, 30
    %v179 = vsub.s32 %v175, %v178
    %vm180 = vcmp.lt.s32.totalorder %v179, 0
    %v181 = vsub.s32 0, %v179
    %v182 = vsel %vm180, %v181, %v179
    %v183 = vclz %v182
    %v184 = vsub.s32 %v183, 2
    %vm185 = vcmp.gt.s32.totalorder 0, %v184
    %v186 = vsel %vm185, 0, %v184
    %v187 = vsub.s32 32, %v186
    %v188 = vshll.u32 %v179, %v186
    %v189 = vshrl.u32 %v171, %v187
    %v190 = vor.u32 %v188, %v189
    %v191 = vsub.s32 4294967266, %v186
    %v192 = vadd.s32 %v191, 127
    %v193 = vshll.u32 %v192, 23
    %v194 = vor.u32 4788187, %v193
    %v195 = vand.u32 2147483647, %v194
    %v197 = vcvt.s32.f32 %v190
    %v198 = vmul.f32 %v197, %v195
    %v199 = vxor.u32 %v198, 2147483648
    %v200 = vsel %vm117, %v199, %v198
    %v201 = vsub.s32 4, %v177
    %v202 = vsel %vm117, %v201, %v177
    %v203 = vsel %vm116, %v113, %v200
    %v204 = vsel %vm116, 0, %v202
    %v205 = vcosq.f32.pop %v203
    %v206 = vsinq.f32.pop %v203
    %vm207 = vweird.f32 %v113
    %v208 = vand.u32 %v204, 3
    %vm209 = vcmp.lt.s32.totalorder %v208, 2
    %vm210 = vcmp.eq.s32.totalorder %v208, 0
    %v211 = vxor.u32 %v206, 2147483648
    %v212 = vsel %vm210, %v205, %v211
    %vm213 = vcmp.eq.s32.totalorder %v208, 2
    %v214 = vxor.u32 %v205, 2147483648
    %v215 = vsel %vm213, %v214, %v206
    %v216 = vsel %vm209, %v212, %v215
    %v217 = vsel %vm207, nan, %v216
    %v218 = vand.u32 2147483647, %v114
    %vm219 = vcmp.le.f32.partialorder %v218, 0.7853982
    %vm220 = vcmp.lt.s32.totalorder %v114, 0
    %v221 = vand.u32 %v114, 2139095040
    %v222 = vshrl.u32 %v221, 23
    %v223 = vsub.s32 %v222, 127
    %v224 = vand.u32 2147483647, %v114
    %v225 = vand.u32 %v224, 8388607
    %v226 = vor.u32 %v225, 8388608
    %v227 = vsub.s32 0, %v226
    %v228 = vadd.s32 %v223, 1
    %vm229 = vcmp.gt.s32.totalorder %v228, 0
    %v230 = vsel %vm229, %v228, 0
    %v231 = vshrl.u32 %v230, 5
    %v232 = vand.u32 %v230, 31
    %v233 = vsub.s32 32, %v232
    %v234 = vshrl.u32 683565275, %v233
    %v235 = vshll.u32 683565275, %v232
    %v236 = vshrl.u32 2475754826, %v233
    %v237 = vor.u32 %v235, %v236
    %v238 = vshll.u32 2475754826, %v232
    %v239 = vshrl.u32 2131351028, %v233
    %v240 = vor.u32 %v238, %v239
    %v241 = vshll.u32 2131351028, %v232
    %v242 = vshrl.u32 2102212464, %v233
    %v243 = vor.u32 %v241, %v242
    %v244 = vshll.u32 2102212464, %v232
    %v245 = vshrl.u32 920167782, %v233
    %v246 = vor.u32 %v244, %v245
    %v247 = vshll.u32 920167782, %v232
    %v248 = vshrl.u32 1326507024, %v233
    %v249 = vor.u32 %v247, %v248
    %vm250 = vcmp.lt.s32.totalorder %v231, 1
    %vm251 = vcmp.lt.s32.totalorder %v231, 2
    %vm252 = vcmp.lt.s32.totalorder %v231, 3
    %vm253 = vcmp.lt.s32.totalorder %v231, 4
    %v254 = vsel %vm250, %v234, %v237
    %v255 = vsel %vm253, %v243, 2102212464
    %v256 = vsel %vm252, %v240, %v255
    %v257 = vsel %vm251, %v254, %v256
    %v258 = vsel %vm250, %v237, %v240
    %v259 = vsel %vm253, %v246, 920167782
    %v260 = vsel %vm252, %v243, %v259
    %v261 = vsel %vm251, %v258, %v260
    %v262 = vsel %vm250, %v240, %v243
    %v263 = vsel %vm253, %v249, 1326507024
    %v264 = vsel %vm252, %v246, %v263
    %v265 = vsel %vm251, %v262, %v264
    %v266 = vshll.u32 %v226, 8
    %v267 = vmul.u32.u64.compose %v266, %v265
    %v268 = vextract.low.u32 %v267
    %v269 = vextract.high.u32 %v267
    %v270 = vmul.u32.u64.compose %v266, %v261
    %v271 = vextract.low.u32 %v270
    %v272 = vextract.high.u32 %v270
    %v273 = vmul.u32 %v266, %v257
    %v274 = vadd.s32 %v269, %v271
    %vm275 = vc.u32 %v269, %v271
    %v276 = vadd.s32 %v272, 1
    %v277 = vsel %vm275, %v276, %v272
    %v278 = vadd.s32 %v273, %v277
    %v279 = vadd.s32 %v278, 536870912
    %v280 = vshrl.u32 %v279, 30
    %v281 = vshll.u32 %v280, 30
    %v282 = vsub.s32 %v278, %v281
    %vm283 = vcmp.lt.s32.totalorder %v282, 0
    %v284 = vsub.s32 0, %v282
    %v285 = vsel %vm283, %v284, %v282
    %v286 = vclz %v285
    %v287 = vsub.s32 %v286, 2
    %vm288 = vcmp.gt.s32.totalorder 0, %v287
    %v289 = vsel %vm288, 0, %v287
    %v290 = vsub.s32 32, %v289
    %v291 = vshll.u32 %v282, %v289
    %v292 = vshrl.u32 %v274, %v290
    %v293 = vor.u32 %v291, %v292
    %v294 = vsub.s32 4294967266, %v289
    %v295 = vadd.s32 %v294, 127
    %v296 = vshll.u32 %v295, 23
    %v297 = vor.u32 4788187, %v296
    %v298 = vand.u32 2147483647, %v297
    %v300 = vcvt.s32.f32 %v293
    %v301 = vmul.f32 %v300, %v298
    %v302 = vxor.u32 %v301, 2147483648
    %v303 = vsel %vm220, %v302, %v301
    %v304 = vsub.s32 4, %v280
    %v305 = vsel %vm220, %v304, %v280
    %v306 = vsel %vm219, %v114, %v303
    %v307 = vsel %vm219, 0, %v305
    %v308 = vcosq.f32.pop %v306
    %v309 = vsinq.f32.pop %v306
    %vm310 = vweird.f32 %v114
    %v311 = vand.u32 %v307, 3
    %vm312 = vcmp.lt.s32.totalorder %v311, 2
    %vm313 = vcmp.eq.s32.totalorder %v311, 0
    %v314 = vxor.u32 %v309, 2147483648
    %v315 = vsel %vm313, %v308, %v314
    %vm316 = vcmp.eq.s32.totalorder %v311, 2
    %v317 = vxor.u32 %v308, 2147483648
    %v318 = vsel %vm316, %v317, %v309
    %v319 = vsel %vm312, %v315, %v318
    %v320 = vsel %vm310, nan, %v319
    %v321 = vmul.f32 %v105, %v217
    %v322 = vmul.f32 %v112, %v320
    %v323 = vmul.f32 %v321, 0.1
    %v324 = vmul.f32 %v322, 0.1
    %v325 = vld [vmem:[#allocation4] sm:$0xff]
    %v326 = vld [vmem:[#allocation4 + $0x8] sm:$0xff]
    %v327 = vadd.f32 %v325, %v323
    %v328 = vadd.f32 %v326, %v324
    %329 = vst [vmem:[#allocation7] sm:$0xff] %v327
    %330 = vst [vmem:[#allocation7 + $0x8] sm:$0xff] %v328
    // Predicated region
    $region10: #{tpu_custom_call.1} parent=1 // pred_check
      _
    $region11: #{tpu_custom_call.1} parent=1 // pred_check_branch
      %332 = sbr.rel (0) target = $region13
    $region12: #{tpu_custom_call.1} parent=1 // pred_region
      %s334 = ssub.s32 256, 256
      %335 = vsyncadd [#allocation6], %s334
      %s336 = sshll.u32 [#allocation7], 4
      %s337 = int_to_ptr.vmem [resolvable:$true] %s336
      %342 = dma.vmem_to_hbm [thread:$0]  %s337, 256, %s2, [#allocation6], 128, 128, 8
    $region13: #{tpu_custom_call.1} parent=1 // pred_fallthru
      _
    // Predicated region
    $region14: #{tpu_custom_call.1} parent=1 // pred_check
      _
    $region15: #{tpu_custom_call.1} parent=1 // pred_check_branch
      %344 = sbr.rel (0) target = $region17
    $region16: #{tpu_custom_call.1} parent=1 // pred_region
      %345 = dma.done [#allocation6], 256
    $region17: #{tpu_custom_call.1} parent=1 // pred_fallthru
      _
    %346 = vsyncpa [#allocation5], 1
    %347 = vsyncpa [#allocation6], 1

</llo_original>
